<compile_context>
chip_gen: v7x
topology: tpu7x:2x2x1
jax: 0.10.0
libtpu: 0.0.40
codegen_flags: <defaults>
</compile_context>

<pallas_src>
import jax
import jax.numpy as jnp
from jax.experimental import pallas as pl
from jax.experimental.pallas import tpu as pltpu

OUT_PAD = 128  # lane-dense padded output width (>= 128 lanes => unmasked stores)


def mlp_kernel(x_ref, w1_ref, b1_ref, w2_ref, b2_ref, w3_ref, b3_ref, o_ref):
    # fc1 + relu : MXU matmul (bf16 or f32 operands), f32 accumulate;
    # bias add / relu run on the VPU in f32 (v5e has no native bf16 VALU ops).
    h = jnp.dot(x_ref[...], w1_ref[...], preferred_element_type=jnp.float32)
    h = jnp.maximum(h + b1_ref[...].astype(jnp.float32), 0.0)
    # fc2 + relu
    h = jnp.dot(h.astype(w2_ref.dtype), w2_ref[...],
                preferred_element_type=jnp.float32)
    h = jnp.maximum(h + b2_ref[...].astype(jnp.float32), 0.0)
    # fc3 (no activation). w3/b3 are pre-padded to OUT_PAD columns (zeros), so
    # the result is already lane-dense and the store is a full-width vst.
    h = jnp.dot(h.astype(w3_ref.dtype), w3_ref[...],
                preferred_element_type=jnp.float32)
    h = h + b3_ref[...].astype(jnp.float32)
    o_ref[...] = h.astype(o_ref.dtype)


def neural_net_forward(x, w1, b1, w2, b2, w3, b3, *, tile_b=1024):
    """fc1 -> relu -> fc2 -> relu -> fc3 on TPU via a batch-tiled Pallas kernel."""
    B, in_dim = x.shape
    out_dim = w3.shape[1]

    # Zero-pad fc3 weight/bias to a lane-dense output width (layout plumbing,
    # negligible bytes). Padded columns are exactly zero in the result.
    w3p = jnp.zeros((w3.shape[0], OUT_PAD), w3.dtype).at[:, :out_dim].set(w3)
    b3p = jnp.zeros((1, OUT_PAD), b3.dtype).at[:, :out_dim].set(b3)

    # Largest batch tile up to `tile_b`, multiple of 8 (sublane constraint).
    tb = max(8, min(tile_b, ((B + 7) // 8) * 8))
    grid = (pl.cdiv(B, tb),)

    const2d = lambda i: (0, 0)
    full = lambda a: pl.BlockSpec(a.shape, const2d)  # VMEM-resident across steps

    out_padded = pl.pallas_call(
        mlp_kernel,
        out_shape=jax.ShapeDtypeStruct((B, OUT_PAD), jnp.float32),
        grid=grid,
        in_specs=[
            pl.BlockSpec((tb, in_dim), lambda i: (i, 0)),  # x: tiled over batch
            full(w1), full(b1),
            full(w2), full(b2),
            full(w3p), full(b3p),
        ],
        out_specs=pl.BlockSpec((tb, OUT_PAD), lambda i: (i, 0)),
        compiler_params=pltpu.CompilerParams(
            dimension_semantics=("parallel",),  # shard batch tiles across TCs (v7x)
        ),
    )(x, w1, b1, w2, b2, w3p, b3p)

    return out_padded[:, :out_dim]


def init_params(key, dtype=jnp.float32):
    # Deterministic synthetic init mimicking nn.Linear's uniform(-1/sqrt(in), 1/sqrt(in)).
    def linear(key, fan_in, fan_out):
        kw, kb = jax.random.split(key)
        bound = 1.0 / (fan_in ** 0.5)
        w = jax.random.uniform(kw, (fan_in, fan_out), jnp.float32, -bound, bound)
        b = jax.random.uniform(kb, (1, fan_out), jnp.float32, -bound, bound)
        return w.astype(dtype), b.astype(dtype)

    k1, k2, k3 = jax.random.split(key, 3)
    w1, b1 = linear(k1, 16, 32)
    w2, b2 = linear(k2, 32, 10)
    w3, b3 = linear(k3, 10, 5)
    return w1, b1, w2, b2, w3, b3


if __name__ == "__main__":
    key = jax.random.PRNGKey(0)
    kx, kp = jax.random.split(key)

    B = 8
    # HBM-resident tensors in bf16 (halves the dominant HBM traffic).
    x = jax.random.normal(kx, (B, 16), jnp.float32).astype(jnp.bfloat16)
    w1, b1, w2, b2, w3, b3 = init_params(kp, dtype=jnp.bfloat16)

    out = neural_net_forward(x, w1, b1, w2, b2, w3, b3)
    out = jax.block_until_ready(out)

    # Pure-JAX reference mirroring the kernel's precision choices
    # (bf16 operands, f32 accumulation, bf16 re-cast of intermediates).
    f32 = jnp.float32
    h = jnp.maximum(x.astype(f32) @ w1.astype(f32) + b1.astype(f32), 0.0)
    h = h.astype(jnp.bfloat16).astype(f32)
    h = jnp.maximum(h @ w2.astype(f32) + b2.astype(f32), 0.0)
    h = h.astype(jnp.bfloat16).astype(f32)
    ref = h @ w3.astype(f32) + b3.astype(f32)

    assert out.shape == (B, 5)
    assert out.dtype == jnp.float32
    assert jnp.allclose(out, ref, atol=1e-2, rtol=1e-2), (
        f"max abs err {jnp.max(jnp.abs(out - ref))}")

    print("KERNEL_OK")
</pallas_src>

<mosaic_0001>
module attributes {stable_mosaic.version = 11 : i64} {
  func.func @mlp_kernel(%arg0: i32, %arg1: memref<8x16xbf16, #tpu.memory_space<vmem>>, %arg2: memref<16x32xbf16, #tpu.memory_space<vmem>>, %arg3: memref<1x32xbf16, #tpu.memory_space<vmem>>, %arg4: memref<32x10xbf16, #tpu.memory_space<vmem>>, %arg5: memref<1x10xbf16, #tpu.memory_space<vmem>>, %arg6: memref<10x128xbf16, #tpu.memory_space<vmem>>, %arg7: memref<1x128xbf16, #tpu.memory_space<vmem>>, %arg8: memref<8x128xf32, #tpu.memory_space<vmem>>) attributes {dimension_semantics = [#tpu.dimension_semantics<parallel>], iteration_bounds = array<i64: 1>, scalar_prefetch = 0 : i64, scratch_operands = 0 : i64, tpu.core_type = #tpu.core_type<tc>, window_params = [{transform_indices = @transform_0, window_bounds = array<i64: 8, 16>}, {pipeline_mode = #tpu.pipeline_mode<synchronous>, transform_indices = @transform_1, window_bounds = array<i64: 16, 32>}, {pipeline_mode = #tpu.pipeline_mode<synchronous>, transform_indices = @transform_2, window_bounds = array<i64: 1, 32>}, {pipeline_mode = #tpu.pipeline_mode<synchronous>, transform_indices = @transform_3, window_bounds = array<i64: 32, 10>}, {pipeline_mode = #tpu.pipeline_mode<synchronous>, transform_indices = @transform_4, window_bounds = array<i64: 1, 10>}, {pipeline_mode = #tpu.pipeline_mode<synchronous>, transform_indices = @transform_5, window_bounds = array<i64: 10, 128>}, {pipeline_mode = #tpu.pipeline_mode<synchronous>, transform_indices = @transform_6, window_bounds = array<i64: 1, 128>}, {transform_indices = @transform_7, window_bounds = array<i64: 8, 128>}]} {
    %c0 = arith.constant 0 : index
    %c0_0 = arith.constant 0 : index
    %0 = vector.load %arg1[%c0, %c0_0] : memref<8x16xbf16, #tpu.memory_space<vmem>>, vector<8x16xbf16>
    %c0_1 = arith.constant 0 : index
    %c0_2 = arith.constant 0 : index
    %1 = vector.load %arg2[%c0_1, %c0_2] : memref<16x32xbf16, #tpu.memory_space<vmem>>, vector<16x32xbf16>
    %cst = arith.constant dense<0.000000e+00> : vector<8x32xf32>
    %2 = tpu.matmul %0, %1, %cst {dimension_numbers = #tpu.dot_dimension_numbers<[1], [0], [0], [1], [0, 0, 1, 1], [], []>} : vector<8x16xbf16>, vector<16x32xbf16>, vector<8x32xf32> -> vector<8x32xf32>
    %c0_3 = arith.constant 0 : index
    %c0_4 = arith.constant 0 : index
    %3 = vector.load %arg3[%c0_3, %c0_4] : memref<1x32xbf16, #tpu.memory_space<vmem>>, vector<1x32xbf16>
    %4 = arith.extf %3 : vector<1x32xbf16> to vector<1x32xf32>
    %5 = vector.broadcast %4 : vector<1x32xf32> to vector<8x32xf32>
    %6 = arith.addf %2, %5 : vector<8x32xf32>
    %cst_5 = arith.constant 0.000000e+00 : f32
    %7 = vector.broadcast %cst_5 : f32 to vector<8x32xf32>
    %8 = arith.maximumf %6, %7 : vector<8x32xf32>
    %9 = arith.truncf %8 : vector<8x32xf32> to vector<8x32xbf16>
    %c0_6 = arith.constant 0 : index
    %c0_7 = arith.constant 0 : index
    %10 = vector.load %arg4[%c0_6, %c0_7] : memref<32x10xbf16, #tpu.memory_space<vmem>>, vector<32x10xbf16>
    %cst_8 = arith.constant dense<0.000000e+00> : vector<8x10xf32>
    %11 = tpu.matmul %9, %10, %cst_8 {dimension_numbers = #tpu.dot_dimension_numbers<[1], [0], [0], [1], [0, 0, 1, 1], [], []>} : vector<8x32xbf16>, vector<32x10xbf16>, vector<8x10xf32> -> vector<8x10xf32>
    %c0_9 = arith.constant 0 : index
    %c0_10 = arith.constant 0 : index
    %12 = vector.load %arg5[%c0_9, %c0_10] : memref<1x10xbf16, #tpu.memory_space<vmem>>, vector<1x10xbf16>
    %13 = arith.extf %12 : vector<1x10xbf16> to vector<1x10xf32>
    %14 = vector.broadcast %13 : vector<1x10xf32> to vector<8x10xf32>
    %15 = arith.addf %11, %14 : vector<8x10xf32>
    %cst_11 = arith.constant 0.000000e+00 : f32
    %16 = vector.broadcast %cst_11 : f32 to vector<8x10xf32>
    %17 = arith.maximumf %15, %16 : vector<8x10xf32>
    %18 = arith.truncf %17 : vector<8x10xf32> to vector<8x10xbf16>
    %c0_12 = arith.constant 0 : index
    %c0_13 = arith.constant 0 : index
    %19 = vector.load %arg6[%c0_12, %c0_13] : memref<10x128xbf16, #tpu.memory_space<vmem>>, vector<10x128xbf16>
    %cst_14 = arith.constant dense<0.000000e+00> : vector<8x128xf32>
    %20 = tpu.matmul %18, %19, %cst_14 {dimension_numbers = #tpu.dot_dimension_numbers<[1], [0], [0], [1], [0, 0, 1, 1], [], []>} : vector<8x10xbf16>, vector<10x128xbf16>, vector<8x128xf32> -> vector<8x128xf32>
    %c0_15 = arith.constant 0 : index
    %c0_16 = arith.constant 0 : index
    %21 = vector.load %arg7[%c0_15, %c0_16] : memref<1x128xbf16, #tpu.memory_space<vmem>>, vector<1x128xbf16>
    %22 = arith.extf %21 : vector<1x128xbf16> to vector<1x128xf32>
    %23 = vector.broadcast %22 : vector<1x128xf32> to vector<8x128xf32>
    %24 = arith.addf %20, %23 : vector<8x128xf32>
    %c0_17 = arith.constant 0 : index
    %c0_18 = arith.constant 0 : index
    %25 = vector.load %arg8[%c0_17, %c0_18] : memref<8x128xf32, #tpu.memory_space<vmem>>, vector<8x128xf32>
    tpu.vector_store %arg8[%c0_17, %c0_18], %24 {strides = array<i32>} : memref<8x128xf32, #tpu.memory_space<vmem>>, vector<8x128xf32>,
    return
  }
  func.func @transform_0(%arg0: i32) -> (i32, i32) {
    %c0_i32 = arith.constant 0 : i32
    %c0_i32_0 = arith.constant 0 : i32
    return %arg0, %c0_i32 : i32, i32
  }
  func.func @transform_1(%arg0: i32) -> (i32, i32) {
    %c0_i32 = arith.constant 0 : i32
    %c0_i32_0 = arith.constant 0 : i32
    %c0_i32_1 = arith.constant 0 : i32
    return %c0_i32, %c0_i32_0 : i32, i32
  }
  func.func @transform_2(%arg0: i32) -> (i32, i32) {
    %c0_i32 = arith.constant 0 : i32
    %c0_i32_0 = arith.constant 0 : i32
    %c0_i32_1 = arith.constant 0 : i32
    return %c0_i32, %c0_i32_0 : i32, i32
  }
  func.func @transform_3(%arg0: i32) -> (i32, i32) {
    %c0_i32 = arith.constant 0 : i32
    %c0_i32_0 = arith.constant 0 : i32
    %c0_i32_1 = arith.constant 0 : i32
    return %c0_i32, %c0_i32_0 : i32, i32
  }
  func.func @transform_4(%arg0: i32) -> (i32, i32) {
    %c0_i32 = arith.constant 0 : i32
    %c0_i32_0 = arith.constant 0 : i32
    %c0_i32_1 = arith.constant 0 : i32
    return %c0_i32, %c0_i32_0 : i32, i32
  }
  func.func @transform_5(%arg0: i32) -> (i32, i32) {
    %c0_i32 = arith.constant 0 : i32
    %c0_i32_0 = arith.constant 0 : i32
    %c0_i32_1 = arith.constant 0 : i32
    return %c0_i32, %c0_i32_0 : i32, i32
  }
  func.func @transform_6(%arg0: i32) -> (i32, i32) {
    %c0_i32 = arith.constant 0 : i32
    %c0_i32_0 = arith.constant 0 : i32
    %c0_i32_1 = arith.constant 0 : i32
    return %c0_i32, %c0_i32_0 : i32, i32
  }
  func.func @transform_7(%arg0: i32) -> (i32, i32) {
    %c0_i32 = arith.constant 0 : i32
    %c0_i32_0 = arith.constant 0 : i32
    return %arg0, %c0_i32 : i32, i32
  }
}

</mosaic_0001>

<llo_original>
// kernel: tpu_custom_call.1
$region0: #{tpu_custom_call.1}
  #allocation0 [shape = 'u32[]', space=smem, size = 0x4, offset = 0x4, fixed_abs, tag = 'smem constant byte address 0x4 - core index']
  #allocation1 [shape = 'u32[144,128]{1,0:T(1,128)}', space=vmem, size = 0x12000, scoped, tag = 'internal scratch']
  %s0 = inlined_call_operand.vmem [shape: bf16[8,16], index: 0, kind: input, shape index: {}]
  %s1 = inlined_call_operand.vmem [shape: bf16[16,32], index: 1, kind: input, shape index: {}]
  %s2 = inlined_call_operand.vmem [shape: bf16[1,32], index: 2, kind: input, shape index: {}]
  %s3 = inlined_call_operand.vmem [shape: bf16[32,10], index: 3, kind: input, shape index: {}]
  %s4 = inlined_call_operand.vmem [shape: bf16[1,10], index: 4, kind: input, shape index: {}]
  %s5 = inlined_call_operand.vmem [shape: bf16[10,128], index: 5, kind: input, shape index: {}]
  %s6 = inlined_call_operand.vmem [shape: bf16[1,128], index: 6, kind: input, shape index: {}]
  %s7 = inlined_call_operand.hbm [shape: f32[8,128], index: 7, kind: output, shape index: {}]
  %s8 = sld [smem:[#allocation0]]
  $region38: #{tpu_custom_call.1} parent=0
    _
  %s10 = ssub.s32 1, %s8
  %s11 = scalar_select 0, %s10, %s8
  $region1: #{tpu_custom_call.1} parent=0
    #allocation2 [shape = 'u8[4096]{0}', space=vmem, size = 0x1000, scoped, tag = 'output window, operand 0, single buffered']
    #allocation3 [shape = 's32[1]{0}', space=sflag, size = 0x4, scoped, tag = 'scoped memory for tpu_custom_call.1']
    %12 = vsyncpa [#allocation3], 0
    // Predicated region
    $region2: #{tpu_custom_call.1} parent=1 // pred_check
      _
    $region3: #{tpu_custom_call.1} parent=1 // pred_check_branch
      %14 = sbr.rel (0) target = $region5
    $region4: #{tpu_custom_call.1} parent=1 // pred_region
      _
    $region5: #{tpu_custom_call.1} parent=1 // pred_fallthru
      _
    // Predicated region
    $region6: #{tpu_custom_call.1} parent=1 // pred_check
      _
    $region7: #{tpu_custom_call.1} parent=1 // pred_check_branch
      %16 = sbr.rel (0) target = $region9
    $region8: #{tpu_custom_call.1} parent=1 // pred_region
      _
    $region9: #{tpu_custom_call.1} parent=1 // pred_fallthru
      _
    // Predicated region
    $region10: #{tpu_custom_call.1} parent=1 // pred_check
      _
    $region11: #{tpu_custom_call.1} parent=1 // pred_check_branch
      %18 = sbr.rel (0) target = $region13
    $region12: #{tpu_custom_call.1} parent=1 // pred_region
      _
    $region13: #{tpu_custom_call.1} parent=1 // pred_fallthru
      _
    // Predicated region
    $region14: #{tpu_custom_call.1} parent=1 // pred_check
      _
    $region15: #{tpu_custom_call.1} parent=1 // pred_check_branch
      %20 = sbr.rel (0) target = $region17
    $region16: #{tpu_custom_call.1} parent=1 // pred_region
      _
    $region17: #{tpu_custom_call.1} parent=1 // pred_fallthru
      _
    // Predicated region
    $region18: #{tpu_custom_call.1} parent=1 // pred_check
      _
    $region19: #{tpu_custom_call.1} parent=1 // pred_check_branch
      %22 = sbr.rel (0) target = $region21
    $region20: #{tpu_custom_call.1} parent=1 // pred_region
      _
    $region21: #{tpu_custom_call.1} parent=1 // pred_fallthru
      _
    // Predicated region
    $region22: #{tpu_custom_call.1} parent=1 // pred_check
      _
    $region23: #{tpu_custom_call.1} parent=1 // pred_check_branch
      %24 = sbr.rel (0) target = $region25
    $region24: #{tpu_custom_call.1} parent=1 // pred_region
      _
    $region25: #{tpu_custom_call.1} parent=1 // pred_fallthru
      _
    // Predicated region
    $region26: #{tpu_custom_call.1} parent=1 // pred_check
      _
    $region27: #{tpu_custom_call.1} parent=1 // pred_check_branch
      %26 = sbr.rel (0) target = $region29
    $region28: #{tpu_custom_call.1} parent=1 // pred_region
      _
    $region29: #{tpu_custom_call.1} parent=1 // pred_fallthru
      _
    %v28 = vld [vmem:[%s0] sm:$0xf]
    %v29 = vld [vmem:[%s1] sm:$0xf]
    %v30 = vld [vmem:[%s1 + $0x4] sm:$0xf]
    %v31 = vld [vmem:[%s2] sm:$0x1]
    %v32 = vunpack.c.l.bf16 %v31
    %v33 = vlaneseq
    %v34 = vshrl.u32 %v33, 7
    %v35 = vsub.s32 0, %v34
    %v36 = vrot.slane %v32, %v35
    %v39 = vunpack.c.l.b16 %v29
    %v40 = vunpack.c.l.b16 %v30
    %v41 = vpack.c.b16 %v40, %v39
    %vm43 = vcmask 130048
    %v45 = vsel %vm43, %v28, 0
    %47 = vmatprep.subr.bf16.mxu0 0
    %48 = vmatpush1.bf16.msra.mxu0 %v41
    %49 = vmatprep.subr.bf16.mxu0 0
    %50 = vmatpush1.bf16.msra.mxu0 0
    %51 = vmatprep.subr.bf16.mxu0 0
    %52 = vmatpush1.bf16.msra.mxu0 0
    %53 = vmatprep.subr.bf16.mxu0 0
    %54 = vmatpush1.bf16.msra.mxu0 0
    %55 = vmatprep.subr.bf16.mxu0 0
    %56 = vmatpush1.bf16.msra.mxu0 0
    %57 = vmatprep.subr.bf16.mxu0 0
    %58 = vmatpush1.bf16.msra.mxu0 0
    %59 = vmatprep.subr.bf16.mxu0 0
    %60 = vmatpush1.bf16.msra.mxu0 0
    %61 = vmatprep.subr.bf16.mxu0 0
    %62 = vmatpush1.bf16.msra.mxu0 0
    %63 = vmatprep.subr.bf16.mxu0 0
    %64 = vmatpush1.bf16.msra.mxu0 0
    %65 = vmatprep.subr.bf16.mxu0 0
    %66 = vmatpush1.bf16.msra.mxu0 0
    %67 = vmatprep.subr.bf16.mxu0 0
    %68 = vmatpush1.bf16.msra.mxu0 0
    %69 = vmatprep.subr.bf16.mxu0 0
    %70 = vmatpush1.bf16.msra.mxu0 0
    %71 = vmatprep.subr.bf16.mxu0 0
    %72 = vmatpush1.bf16.msra.mxu0 0
    %73 = vmatprep.subr.bf16.mxu0 0
    %74 = vmatpush1.bf16.msra.mxu0 0
    %75 = vmatprep.subr.bf16.mxu0 0
    %76 = vmatpush1.bf16.msra.mxu0 0
    %77 = vmatprep.subr.bf16.mxu0 0
    %78 = vmatpush1.bf16.msra.mxu0 0
    %79 = vmatprep.mubr.bf16.mxu0 0
    %80 = vmatmul.mubr.bf16.gmra.mrb[0].mxu0 %v45
    %v81 = vpop.f32.mrb[0].mxu0
    %v82 = vadd.f32 %v36, %v81
    %v83 = vpop.f32.mrb[0].mxu0
    %v84 = vpop.f32.mrb[0].mxu0
    %v85 = vpop.f32.mrb[0].mxu0
    %86 = vdwg.mxu0
    %v87 = vmax.f32 %v82, 0.0
    %v88 = vpack.c.bf16 %v87, %v87
    %v89 = vld [vmem:[%s3] sm:$0xf]
    %v90 = vld [vmem:[%s3 + $0x4] sm:$0xf]
    %v91 = vld [vmem:[%s3 + $0x8] sm:$0xf]
    %v92 = vld [vmem:[%s3 + $0xc] sm:$0xf]
    %v93 = vld [vmem:[%s4] sm:$0x1]
    %v94 = vunpack.c.l.bf16 %v93
    %v95 = vlaneseq
    %v96 = vshrl.u32 %v95, 7
    %v97 = vsub.s32 0, %v96
    %v98 = vrot.slane %v94, %v97
    %v103 = vunpack.c.l.b16 %v89
    %v104 = vunpack.c.l.b16 %v90
    %v105 = vunpack.c.l.b16 %v91
    %v106 = vunpack.c.l.b16 %v92
    %v107 = vpack.c.b16 %v104, %v103
    %v108 = vpack.c.b16 %v106, %v105
    %vm111 = vcmask 261120
    %v113 = vsel %vm111, %v88, 0
    %115 = vmatprep.subr.bf16.mxu0 0
    %116 = vmatpush1.bf16.msra.mxu0 %v107
    %117 = vmatprep.subr.bf16.mxu0 0
    %118 = vmatpush1.bf16.msra.mxu0 %v108
    %119 = vmatprep.subr.bf16.mxu0 0
    %120 = vmatpush1.bf16.msra.mxu0 0
    %121 = vmatprep.subr.bf16.mxu0 0
    %122 = vmatpush1.bf16.msra.mxu0 0
    %123 = vmatprep.subr.bf16.mxu0 0
    %124 = vmatpush1.bf16.msra.mxu0 0
    %125 = vmatprep.subr.bf16.mxu0 0
    %126 = vmatpush1.bf16.msra.mxu0 0
    %127 = vmatprep.subr.bf16.mxu0 0
    %128 = vmatpush1.bf16.msra.mxu0 0
    %129 = vmatprep.subr.bf16.mxu0 0
    %130 = vmatpush1.bf16.msra.mxu0 0
    %131 = vmatprep.subr.bf16.mxu0 0
    %132 = vmatpush1.bf16.msra.mxu0 0
    %133 = vmatprep.subr.bf16.mxu0 0
    %134 = vmatpush1.bf16.msra.mxu0 0
    %135 = vmatprep.subr.bf16.mxu0 0
    %136 = vmatpush1.bf16.msra.mxu0 0
    %137 = vmatprep.subr.bf16.mxu0 0
    %138 = vmatpush1.bf16.msra.mxu0 0
    %139 = vmatprep.subr.bf16.mxu0 0
    %140 = vmatpush1.bf16.msra.mxu0 0
    %141 = vmatprep.subr.bf16.mxu0 0
    %142 = vmatpush1.bf16.msra.mxu0 0
    %143 = vmatprep.subr.bf16.mxu0 0
    %144 = vmatpush1.bf16.msra.mxu0 0
    %145 = vmatprep.subr.bf16.mxu0 0
    %146 = vmatpush1.bf16.msra.mxu0 0
    %147 = vmatprep.mubr.bf16.mxu0 0
    %148 = vmatmul.mubr.bf16.gmra.mrb[0].mxu0 %v113
    %v149 = vpop.f32.mrb[0].mxu0
    %v150 = vadd.f32 %v98, %v149
    %v151 = vpop.f32.mrb[0].mxu0
    %v152 = vpop.f32.mrb[0].mxu0
    %v153 = vpop.f32.mrb[0].mxu0
    %154 = vdwg.mxu0
    %v155 = vmax.f32 %v150, 0.0
    %v156 = vpack.c.bf16 %v155, %v155
    %v157 = vld [vmem:[%s5] sm:$0xf]
    %v158 = vld [vmem:[%s5 + $0x4] sm:$0x1]
    %v159 = vld [vmem:[%s6] sm:$0x1]
    %v160 = vunpack.c.l.bf16 %v159
    %v161 = vlaneseq
    %v162 = vshrl.u32 %v161, 7
    %v163 = vsub.s32 0, %v162
    %v164 = vrot.slane %v160, %v163
    %v167 = vunpack.c.l.b16 %v157
    %v168 = vunpack.c.l.b16 %v158
    %v169 = vpack.c.b16 %v168, %v167
    %vm170 = vcmask 80896
    %v172 = vsel %vm170, %v156, 0
    %vm174 = vcmask 1044480
    %v176 = vsel %vm174, %v169, 0
    %178 = vmatprep.subr.bf16.mxu0 0
    %179 = vmatpush1.bf16.msra.mxu0 %v176
    %180 = vmatprep.subr.bf16.mxu0 0
    %181 = vmatpush1.bf16.msra.mxu0 0
    %182 = vmatprep.subr.bf16.mxu0 0
    %183 = vmatpush1.bf16.msra.mxu0 0
    %184 = vmatprep.subr.bf16.mxu0 0
    %185 = vmatpush1.bf16.msra.mxu0 0
    %186 = vmatprep.subr.bf16.mxu0 0
    %187 = vmatpush1.bf16.msra.mxu0 0
    %188 = vmatprep.subr.bf16.mxu0 0
    %189 = vmatpush1.bf16.msra.mxu0 0
    %190 = vmatprep.subr.bf16.mxu0 0
    %191 = vmatpush1.bf16.msra.mxu0 0
    %192 = vmatprep.subr.bf16.mxu0 0
    %193 = vmatpush1.bf16.msra.mxu0 0
    %194 = vmatprep.subr.bf16.mxu0 0
    %195 = vmatpush1.bf16.msra.mxu0 0
    %196 = vmatprep.subr.bf16.mxu0 0
    %197 = vmatpush1.bf16.msra.mxu0 0
    %198 = vmatprep.subr.bf16.mxu0 0
    %199 = vmatpush1.bf16.msra.mxu0 0
    %200 = vmatprep.subr.bf16.mxu0 0
    %201 = vmatpush1.bf16.msra.mxu0 0
    %202 = vmatprep.subr.bf16.mxu0 0
    %203 = vmatpush1.bf16.msra.mxu0 0
    %204 = vmatprep.subr.bf16.mxu0 0
    %205 = vmatpush1.bf16.msra.mxu0 0
    %206 = vmatprep.subr.bf16.mxu0 0
    %207 = vmatpush1.bf16.msra.mxu0 0
    %208 = vmatprep.subr.bf16.mxu0 0
    %209 = vmatpush1.bf16.msra.mxu0 0
    %210 = vmatprep.mubr.bf16.mxu0 0
    %211 = vmatmul.mubr.bf16.gmra.mrb[0].mxu0 %v172
    %v212 = vpop.f32.mrb[0].mxu0
    %v213 = vadd.f32 %v164, %v212
    %v214 = vpop.f32.mrb[0].mxu0
    %v215 = vpop.f32.mrb[0].mxu0
    %v216 = vpop.f32.mrb[0].mxu0
    %217 = vdwg.mxu0
    %218 = vst [vmem:[#allocation2] sm:$0xff] %v213
    // Predicated region
    $region30: #{tpu_custom_call.1} parent=1 // pred_check
      _
    $region31: #{tpu_custom_call.1} parent=1 // pred_check_branch
      %220 = sbr.rel (0) target = $region33
    $region32: #{tpu_custom_call.1} parent=1 // pred_region
      %s222 = ssub.s32 128, 128
      %223 = vsyncadd [#allocation3], %s222
      %s225 = sshll.u32 [#allocation2], 4
      %s226 = int_to_ptr.vmem [resolvable:$true] %s225
      %228 = dma.vmem_to_hbm [thread:$0]  %s226, 128, %s7, [#allocation3]
    $region33: #{tpu_custom_call.1} parent=1 // pred_fallthru
      _
    // Predicated region
    $region34: #{tpu_custom_call.1} parent=1 // pred_check
      _
    $region35: #{tpu_custom_call.1} parent=1 // pred_check_branch
      %230 = sbr.rel (0) target = $region37
    $region36: #{tpu_custom_call.1} parent=1 // pred_region
      %231 = dma.done [#allocation3], 128
    $region37: #{tpu_custom_call.1} parent=1 // pred_fallthru
      _
    %232 = vsyncpa [#allocation3], 1

</llo_original>
